<compile_context>
chip_gen: v7x
topology: tpu7x:2x2x1
jax: 0.10.0
libtpu: 0.0.40
codegen_flags: <defaults>
</compile_context>

<pallas_src>
import functools

import jax
import jax.numpy as jnp
from jax.experimental import pallas as pl
from jax.experimental.pallas import tpu as pltpu

IN_DIM = 1
HID = 30
OUT_DIM = 3

# ---- packed parameter slab layout: (40 sublanes x 128 lanes) f32 = 20 KiB ----
SLAB_ROWS = 40            # multiple of 8 (sublane tile)
SLAB_COLS = 128           # one lane tile
W1_COL = 30               # slab[0:30, 30]     = W1[:, 0]   (fan_in == 1)
B1_COL = 31               # slab[0:30, 31]     = b1
B2_COL = 32               # slab[0:30, 32]     = b2
W3_ROW = 32               # slab[32:35, 0:30]  = W3 (out, in)
B3_COL = 30               # slab[32:35, 30]    = b3
                          # slab[0:30, 0:30]   = W2 (out, in)

MAX_TILE = 16 * 1024               # lanes per grid step (~4.5 MiB intermediates)
VMEM_LIMIT_BYTES = 32 * 1024 * 1024


def mlp_kernel(w_ref, x_ref, o_ref, *, matmul_dtype):
    x = x_ref[...]                                              # (1, TILE) batch-on-lanes

    w1 = w_ref[0:HID, W1_COL:W1_COL + 1]                        # (30, 1)
    b1 = w_ref[0:HID, B1_COL:B1_COL + 1]                        # (30, 1)
    w2 = w_ref[0:HID, 0:HID]                                    # (30, 30)
    b2 = w_ref[0:HID, B2_COL:B2_COL + 1]                        # (30, 1)
    w3 = w_ref[W3_ROW:W3_ROW + OUT_DIM, 0:HID]                  # (3, 30)
    b3 = w_ref[W3_ROW:W3_ROW + OUT_DIM, B3_COL:B3_COL + 1]      # (3, 1)

    # Layer 1: K == 1 contraction -> VPU broadcast outer product (f32, no MXU trip).
    h1 = jnp.maximum(w1 * x + b1, 0.0)                          # (30, TILE) f32

    # Layers 2/3: lane-dense MXU matmuls; bf16 operands by default, f32 accumulate.
    h2 = jnp.dot(w2.astype(matmul_dtype), h1.astype(matmul_dtype),
                 preferred_element_type=jnp.float32) + b2
    h2 = jnp.maximum(h2, 0.0)                                   # (30, TILE) f32
    out = jnp.dot(w3.astype(matmul_dtype), h2.astype(matmul_dtype),
                  preferred_element_type=jnp.float32) + b3
    o_ref[...] = out.astype(o_ref.dtype)                        # (3, TILE)


def pack_params(params):
    """Pack PyTorch-convention (out, in) weights + biases into one f32 slab (done once)."""
    slab = jnp.zeros((SLAB_ROWS, SLAB_COLS), jnp.float32)
    slab = slab.at[0:HID, 0:HID].set(params["w2"].astype(jnp.float32))
    slab = slab.at[0:HID, W1_COL].set(params["w1"][:, 0].astype(jnp.float32))
    slab = slab.at[0:HID, B1_COL].set(params["b1"].astype(jnp.float32))
    slab = slab.at[0:HID, B2_COL].set(params["b2"].astype(jnp.float32))
    slab = slab.at[W3_ROW:W3_ROW + OUT_DIM, 0:HID].set(params["w3"].astype(jnp.float32))
    slab = slab.at[W3_ROW:W3_ROW + OUT_DIM, B3_COL].set(params["b3"].astype(jnp.float32))
    return slab


def _round_up(v, m):
    return ((v + m - 1) // m) * m


def _pick_tile(n, tile_n):
    """Lane-aligned batch tile. Big tiles amortize the ~0.35 us/step overhead; at
    the same time we keep >= 2 tiles for mid-size batches (dual-TC balance) and cap
    at MAX_TILE so intermediates fit every generation's scoped VMEM."""
    n_128 = _round_up(max(n, 1), 128)
    if tile_n is not None:
        return min(_round_up(tile_n, 128), max(n_128, 128))
    if n_128 <= 256:
        return n_128
    half = _round_up(pl.cdiv(n_128, 2), 128)
    return min(MAX_TILE, half)


def neural_network_forward(x, slab, *, tile_n=None, matmul_dtype=jnp.bfloat16,
                           feature_major=False):
    """x: (N, 1) float32. slab: pack_params(...) output.

    Returns (N, 3) logits (PyTorch convention) by default; with feature_major=True
    returns the kernel-native (3, N) layout (no trailing transpose -- preferred for
    large N when the consumer can take feature-major data).
    """
    n = x.shape[0]
    # nn.Flatten (already 2D) + move batch to the lane axis: (N, 1) -> (1, N).
    xt = x.reshape(n, -1).reshape(1, n)

    tile = _pick_tile(n, tile_n)
    grid_n = pl.cdiv(n, tile)        # no wrapper pad: ragged last block is masked

    kernel = functools.partial(mlp_kernel, matmul_dtype=matmul_dtype)

    out_t = pl.pallas_call(
        kernel,
        out_shape=jax.ShapeDtypeStruct((OUT_DIM, n), jnp.float32),
        grid=(grid_n,),
        in_specs=[
            # Constant index_map -> weight slab stays VMEM-resident across the grid.
            pl.BlockSpec((SLAB_ROWS, SLAB_COLS), lambda i: (0, 0)),
            pl.BlockSpec((1, tile), lambda i: (0, i)),
        ],
        out_specs=pl.BlockSpec((OUT_DIM, tile), lambda i: (0, i)),
        compiler_params=pltpu.CompilerParams(
            # Parallel batch axis (v7x dual-TC) only when there is work to split.
            dimension_semantics=("parallel",) if grid_n > 1 else ("arbitrary",),
            vmem_limit_bytes=VMEM_LIMIT_BYTES,
        ),
    )(slab, xt)

    if feature_major:
        return out_t                      # (3, N) -- no extra HBM round trip
    return out_t.T                        # (N, 3) PyTorch convention


def init_params(key):
    """Deterministic init mimicking nn.Linear default: U(-1/sqrt(fan_in), 1/sqrt(fan_in))."""
    ks = jax.random.split(key, 6)

    def lin(kw, kb, fan_in, fan_out):
        bound = 1.0 / jnp.sqrt(jnp.float32(fan_in))
        w = jax.random.uniform(kw, (fan_out, fan_in), jnp.float32, -bound, bound)
        b = jax.random.uniform(kb, (fan_out,), jnp.float32, -bound, bound)
        return w, b

    w1, b1 = lin(ks[0], ks[1], IN_DIM, HID)
    w2, b2 = lin(ks[2], ks[3], HID, HID)
    w3, b3 = lin(ks[4], ks[5], HID, OUT_DIM)
    return {"w1": w1, "b1": b1, "w2": w2, "b2": b2, "w3": w3, "b3": b3}


def reference_forward(x, p):
    h1 = jnp.maximum(x @ p["w1"].T + p["b1"], 0.0)
    h2 = jnp.maximum(h1 @ p["w2"].T + p["b2"], 0.0)
    return h2 @ p["w3"].T + p["b3"]


if __name__ == "__main__":
    key = jax.random.PRNGKey(0)
    kx, kx2, kp = jax.random.split(key, 3)

    params = init_params(kp)
    slab = pack_params(params)   # packed once, reused across calls

    # Matches the spec: X = torch.rand(100, 1)  (ragged vs the 128-lane tile)
    N = 100
    x = jax.random.uniform(kx, (N, IN_DIM), jnp.float32)
    ref = reference_forward(x, params)

    # f32 matmul path: bit-tight check.
    logits_f32 = neural_network_forward(x, slab, matmul_dtype=jnp.float32)
    jax.block_until_ready(logits_f32)
    assert logits_f32.shape == (N, OUT_DIM)
    assert jnp.allclose(logits_f32, ref, atol=1e-5, rtol=1e-5)

    # Default bf16-MXU path (perf path for v6e/v7x): relaxed tolerance.
    logits_bf16 = neural_network_forward(x, slab)
    jax.block_until_ready(logits_bf16)
    assert logits_bf16.shape == (N, OUT_DIM)
    assert jnp.allclose(logits_bf16, ref, atol=5e-2, rtol=5e-2)

    # Feature-major output path (no trailing transpose).
    logits_fm = neural_network_forward(x, slab, matmul_dtype=jnp.float32,
                                       feature_major=True)
    jax.block_until_ready(logits_fm)
    assert logits_fm.shape == (OUT_DIM, N)
    assert jnp.allclose(logits_fm, ref.T, atol=1e-5, rtol=1e-5)

    # Ragged-N / multi-tile regression: grid_n == 2 with a masked boundary block.
    N2 = 1000
    x2 = jax.random.uniform(kx2, (N2, IN_DIM), jnp.float32)
    ref2 = reference_forward(x2, params)
    logits2 = neural_network_forward(x2, slab, matmul_dtype=jnp.float32)
    jax.block_until_ready(logits2)
    assert logits2.shape == (N2, OUT_DIM)
    assert jnp.allclose(logits2, ref2, atol=1e-5, rtol=1e-5)

    print("KERNEL_OK")
</pallas_src>

<mosaic_0001>
module attributes {stable_mosaic.version = 11 : i64} {
  func.func @mlp_kernel(%arg0: i32, %arg1: memref<40x128xf32, #tpu.memory_space<vmem>>, %arg2: memref<1x128xf32, #tpu.memory_space<vmem>>, %arg3: memref<3x128xf32, #tpu.memory_space<vmem>>) attributes {dimension_semantics = [#tpu.dimension_semantics<arbitrary>], iteration_bounds = array<i64: 1>, scalar_prefetch = 0 : i64, scratch_operands = 0 : i64, tpu.core_type = #tpu.core_type<tc>, window_params = [{pipeline_mode = #tpu.pipeline_mode<synchronous>, transform_indices = @transform_0, window_bounds = array<i64: 40, 128>}, {transform_indices = @transform_1, window_bounds = array<i64: 1, 128>}, {transform_indices = @transform_2, window_bounds = array<i64: 3, 128>}]} {
    %c0 = arith.constant 0 : index
    %c0_0 = arith.constant 0 : index
    %0 = vector.load %arg2[%c0, %c0_0] : memref<1x128xf32, #tpu.memory_space<vmem>>, vector<1x128xf32>
    %c0_1 = arith.constant 0 : index
    %c30 = arith.constant 30 : index
    %1 = vector.load %arg1[%c0_1, %c30] : memref<40x128xf32, #tpu.memory_space<vmem>>, vector<30x1xf32>
    %c0_2 = arith.constant 0 : index
    %c31 = arith.constant 31 : index
    %2 = vector.load %arg1[%c0_2, %c31] : memref<40x128xf32, #tpu.memory_space<vmem>>, vector<30x1xf32>
    %c0_3 = arith.constant 0 : index
    %c0_4 = arith.constant 0 : index
    %3 = vector.load %arg1[%c0_3, %c0_4] : memref<40x128xf32, #tpu.memory_space<vmem>>, vector<30x30xf32>
    %c0_5 = arith.constant 0 : index
    %c32 = arith.constant 32 : index
    %4 = vector.load %arg1[%c0_5, %c32] : memref<40x128xf32, #tpu.memory_space<vmem>>, vector<30x1xf32>
    %c32_6 = arith.constant 32 : index
    %c0_7 = arith.constant 0 : index
    %5 = vector.load %arg1[%c32_6, %c0_7] : memref<40x128xf32, #tpu.memory_space<vmem>>, vector<3x30xf32>
    %c32_8 = arith.constant 32 : index
    %c30_9 = arith.constant 30 : index
    %6 = vector.load %arg1[%c32_8, %c30_9] : memref<40x128xf32, #tpu.memory_space<vmem>>, vector<3x1xf32>
    %7 = vector.broadcast %1 : vector<30x1xf32> to vector<30x128xf32>
    %8 = vector.broadcast %0 : vector<1x128xf32> to vector<30x128xf32>
    %9 = arith.mulf %7, %8 : vector<30x128xf32>
    %10 = vector.broadcast %2 : vector<30x1xf32> to vector<30x128xf32>
    %11 = arith.addf %9, %10 : vector<30x128xf32>
    %cst = arith.constant 0.000000e+00 : f32
    %12 = vector.broadcast %cst : f32 to vector<30x128xf32>
    %13 = arith.maximumf %11, %12 : vector<30x128xf32>
    %cst_10 = arith.constant dense<0.000000e+00> : vector<30x128xf32>
    %14 = tpu.matmul %3, %13, %cst_10 {dimension_numbers = #tpu.dot_dimension_numbers<[1], [0], [0], [1], [0, 0, 1, 1], [], []>} : vector<30x30xf32>, vector<30x128xf32>, vector<30x128xf32> -> vector<30x128xf32>
    %15 = vector.broadcast %4 : vector<30x1xf32> to vector<30x128xf32>
    %16 = arith.addf %14, %15 : vector<30x128xf32>
    %cst_11 = arith.constant 0.000000e+00 : f32
    %17 = vector.broadcast %cst_11 : f32 to vector<30x128xf32>
    %18 = arith.maximumf %16, %17 : vector<30x128xf32>
    %cst_12 = arith.constant dense<0.000000e+00> : vector<3x128xf32>
    %19 = tpu.matmul %5, %18, %cst_12 {dimension_numbers = #tpu.dot_dimension_numbers<[1], [0], [0], [1], [0, 0, 1, 1], [], []>} : vector<3x30xf32>, vector<30x128xf32>, vector<3x128xf32> -> vector<3x128xf32>
    %20 = vector.broadcast %6 : vector<3x1xf32> to vector<3x128xf32>
    %21 = arith.addf %19, %20 : vector<3x128xf32>
    %c0_13 = arith.constant 0 : index
    %c0_14 = arith.constant 0 : index
    %22 = vector.load %arg3[%c0_13, %c0_14] : memref<3x128xf32, #tpu.memory_space<vmem>>, vector<3x128xf32>
    tpu.vector_store %arg3[%c0_13, %c0_14], %21 {strides = array<i32>} : memref<3x128xf32, #tpu.memory_space<vmem>>, vector<3x128xf32>,
    return
  }
  func.func @transform_0(%arg0: i32) -> (i32, i32) {
    %c0_i32 = arith.constant 0 : i32
    %c0_i32_0 = arith.constant 0 : i32
    %c0_i32_1 = arith.constant 0 : i32
    return %c0_i32, %c0_i32_0 : i32, i32
  }
  func.func @transform_1(%arg0: i32) -> (i32, i32) {
    %c0_i32 = arith.constant 0 : i32
    %c0_i32_0 = arith.constant 0 : i32
    return %c0_i32, %arg0 : i32, i32
  }
  func.func @transform_2(%arg0: i32) -> (i32, i32) {
    %c0_i32 = arith.constant 0 : i32
    %c0_i32_0 = arith.constant 0 : i32
    return %c0_i32, %arg0 : i32, i32
  }
}

</mosaic_0001>

<llo_original>
// kernel: tpu_custom_call.1
$region0: #{tpu_custom_call.1}
  #allocation0 [shape = 'u32[]', space=smem, size = 0x4, offset = 0x4, fixed_abs, tag = 'smem constant byte address 0x4 - core index']
  #allocation1 [shape = 'u32[144,128]{1,0:T(1,128)}', space=vmem, size = 0x12000, scoped, tag = 'internal scratch']
  %s0 = inlined_call_operand.hbm [shape: f32[40,128], index: 0, kind: input, shape index: {}]
  %s1 = inlined_call_operand.vmem [shape: f32[1,100], index: 1, kind: input, shape index: {}]
  %s2 = inlined_call_operand.hbm [shape: f32[3,100], index: 2, kind: output, shape index: {}]
  %s3 = sld [smem:[#allocation0]]
  $region22: #{tpu_custom_call.1} parent=0
    _
  %s5 = ssub.s32 1, %s3
  %s6 = scalar_select 0, %s5, %s3
  $region1: #{tpu_custom_call.1} parent=0
    #allocation2 [shape = 'u8[20480]{0}', space=vmem, size = 0x5000, scoped, tag = 'input window, operand 0, single buffered']
    #allocation3 [shape = 's32[1]{0}', space=sflag, size = 0x4, scoped, tag = 'scoped memory for tpu_custom_call.1']
    #allocation4 [shape = 's32[1]{0}', space=sflag, size = 0x4, scoped, tag = 'scoped memory for tpu_custom_call.1']
    #allocation5 [shape = 'u8[2048]{0}', space=vmem, size = 0x800, scoped, tag = 'output window, operand 0, single buffered']
    %7 = vsyncpa [#allocation3], 0
    %8 = vsyncpa [#allocation4], 0
    // Predicated region
    $region2: #{tpu_custom_call.1} parent=1 // pred_check
      _
    $region3: #{tpu_custom_call.1} parent=1 // pred_check_branch
      %10 = sbr.rel (0) target = $region5
    $region4: #{tpu_custom_call.1} parent=1 // pred_region
      %s12 = ssub.s32 640, 640
      %13 = vsyncadd [#allocation3], %s12
      %s14 = sshll.u32 [#allocation2], 4
      %s15 = int_to_ptr.vmem [resolvable:$true] %s14
      %20 = dma.hbm_to_vmem [thread:$0]  %s0, 640, %s15, [#allocation3], 128, 128, 8
    $region5: #{tpu_custom_call.1} parent=1 // pred_fallthru
      _
    // Predicated region
    $region6: #{tpu_custom_call.1} parent=1 // pred_check
      _
    $region7: #{tpu_custom_call.1} parent=1 // pred_check_branch
      %22 = sbr.rel (0) target = $region9
    $region8: #{tpu_custom_call.1} parent=1 // pred_region
      _
    $region9: #{tpu_custom_call.1} parent=1 // pred_fallthru
      _
    // Predicated region
    $region10: #{tpu_custom_call.1} parent=1 // pred_check
      _
    $region11: #{tpu_custom_call.1} parent=1 // pred_check_branch
      %24 = sbr.rel (0) target = $region13
    $region12: #{tpu_custom_call.1} parent=1 // pred_region
      %25 = dma.done [#allocation3], 640
    $region13: #{tpu_custom_call.1} parent=1 // pred_fallthru
      _
    %v26 = vld [vmem:[%s1] sm:$0x1]
    %v27 = vld [vmem:[#allocation2] sm:$0xff]
    %v28 = vld [vmem:[#allocation2 + $0x8] sm:$0xff]
    %v29 = vld [vmem:[#allocation2 + $0x10] sm:$0xff]
    %v30 = vld [vmem:[#allocation2 + $0x18] sm:$0x3f]
    %v31 = vld [vmem:[#allocation2 + $0x20] sm:$0x7]
    %33 = vset.pattern.permute.xlu0 30
    %34 = vperm.xlu0 %33, %v27
    %v35 = vpop.permute.xlu0 %34
    %38 = vset.pattern.permute.xlu0 30
    %39 = vperm.xlu0 %38, %v28
    %v40 = vpop.permute.xlu0 %39
    %43 = vset.pattern.permute.xlu0 30
    %44 = vperm.xlu0 %43, %v29
    %v45 = vpop.permute.xlu0 %44
    %48 = vset.pattern.permute.xlu0 30
    %49 = vperm.xlu0 %48, %v30
    %v50 = vpop.permute.xlu0 %49
    %v53 = vlaneseq
    %v54 = vshrl.u32 %v53, 7
    %v55 = vsub.s32 0, %v54
    %v56 = vrot.slane %v26, %v55
    %v58 = vmul.f32 %v35, %v56
    %v59 = vmul.f32 %v40, %v56
    %v60 = vmul.f32 %v45, %v56
    %v61 = vmul.f32 %v50, %v56
    %62 = vset.pattern.permute.xlu0 31
    %63 = vperm.xlu0 %62, %v27
    %v64 = vpop.permute.xlu0 %63
    %66 = vset.pattern.permute.xlu0 31
    %67 = vperm.xlu0 %66, %v28
    %v68 = vpop.permute.xlu0 %67
    %70 = vset.pattern.permute.xlu0 31
    %71 = vperm.xlu0 %70, %v29
    %v72 = vpop.permute.xlu0 %71
    %74 = vset.pattern.permute.xlu0 31
    %75 = vperm.xlu0 %74, %v30
    %v76 = vpop.permute.xlu0 %75
    %v78 = vadd.f32 %v58, %v64
    %v79 = vadd.f32 %v59, %v68
    %v80 = vadd.f32 %v60, %v72
    %v81 = vadd.f32 %v61, %v76
    %v82 = vmax.f32 %v78, 0.0
    %v83 = vmax.f32 %v79, 0.0
    %v84 = vmax.f32 %v80, 0.0
    %v85 = vmax.f32 %v81, 0.0
    %86 = vset.pattern.permute.xlu0 32
    %87 = vperm.xlu0 %86, %v27
    %v88 = vpop.permute.xlu0 %87
    %90 = vset.pattern.permute.xlu0 32
    %91 = vperm.xlu0 %90, %v28
    %v92 = vpop.permute.xlu0 %91
    %94 = vset.pattern.permute.xlu0 32
    %95 = vperm.xlu0 %94, %v29
    %v96 = vpop.permute.xlu0 %95
    %98 = vset.pattern.permute.xlu0 32
    %99 = vperm.xlu0 %98, %v30
    %v100 = vpop.permute.xlu0 %99
    %vm102 = vcmask 244736
    %v103 = vsel %vm102, %v27, 0
    %v105 = vsel %vm102, %v28, 0
    %v107 = vsel %vm102, %v29, 0
    %v109 = vsel %vm102, %v30, 0
    %vm111 = vcmask 1045504
    %v113 = vsel %vm111, %v85, 0
    %115 = vmatprep.subr.mxu0 0.0
    %116 = vmatpush1.msra.mxu0 %v82
    %117 = vmatprep.subr.mxu0 0.0
    %118 = vmatpush1.msra.mxu0 %v83
    %119 = vmatprep.subr.mxu0 0.0
    %120 = vmatpush1.msra.mxu0 %v84
    %121 = vmatprep.subr.mxu0 0.0
    %122 = vmatpush1.msra.mxu0 %v113
    %123 = vmatprep.subr.mxu0 0.0
    %124 = vmatpush1.msra.mxu0 0.0
    %125 = vmatprep.subr.mxu0 0.0
    %126 = vmatpush1.msra.mxu0 0.0
    %127 = vmatprep.subr.mxu0 0.0
    %128 = vmatpush1.msra.mxu0 0.0
    %129 = vmatprep.subr.mxu0 0.0
    %130 = vmatpush1.msra.mxu0 0.0
    %131 = vmatprep.subr.mxu0 0.0
    %132 = vmatpush1.msra.mxu0 0.0
    %133 = vmatprep.subr.mxu0 0.0
    %134 = vmatpush1.msra.mxu0 0.0
    %135 = vmatprep.subr.mxu0 0.0
    %136 = vmatpush1.msra.mxu0 0.0
    %137 = vmatprep.subr.mxu0 0.0
    %138 = vmatpush1.msra.mxu0 0.0
    %139 = vmatprep.subr.mxu0 0.0
    %140 = vmatpush1.msra.mxu0 0.0
    %141 = vmatprep.subr.mxu0 0.0
    %142 = vmatpush1.msra.mxu0 0.0
    %143 = vmatprep.subr.mxu0 0.0
    %144 = vmatpush1.msra.mxu0 0.0
    %145 = vmatprep.subr.mxu0 0.0
    %146 = vmatpush1.msra.mxu0 0.0
    %147 = vmatprep.subr.mxu0 0.0
    %148 = vmatpush1.msra.mxu0 0.0
    %149 = vmatprep.subr.mxu0 0.0
    %150 = vmatpush1.msra.mxu0 0.0
    %151 = vmatprep.subr.mxu0 0.0
    %152 = vmatpush1.msra.mxu0 0.0
    %153 = vmatprep.subr.mxu0 0.0
    %154 = vmatpush1.msra.mxu0 0.0
    %155 = vmatprep.subr.mxu0 0.0
    %156 = vmatpush1.msra.mxu0 0.0
    %157 = vmatprep.subr.mxu0 0.0
    %158 = vmatpush1.msra.mxu0 0.0
    %159 = vmatprep.subr.mxu0 0.0
    %160 = vmatpush1.msra.mxu0 0.0
    %161 = vmatprep.subr.mxu0 0.0
    %162 = vmatpush1.msra.mxu0 0.0
    %163 = vmatprep.subr.mxu0 0.0
    %164 = vmatpush1.msra.mxu0 0.0
    %165 = vmatprep.subr.mxu0 0.0
    %166 = vmatpush1.msra.mxu0 0.0
    %167 = vmatprep.subr.mxu0 0.0
    %168 = vmatpush1.msra.mxu0 0.0
    %169 = vmatprep.subr.mxu0 0.0
    %170 = vmatpush1.msra.mxu0 0.0
    %171 = vmatprep.subr.mxu0 0.0
    %172 = vmatpush1.msra.mxu0 0.0
    %173 = vmatprep.subr.mxu0 0.0
    %174 = vmatpush1.msra.mxu0 0.0
    %175 = vmatprep.subr.mxu0 0.0
    %176 = vmatpush1.msra.mxu0 0.0
    %177 = vmatprep.subr.mxu0 0.0
    %178 = vmatpush1.msra.mxu0 0.0
    %179 = vmatprep.mubr.f32.mxu0 0.0
    %180 = vmatmul.mubr.f32.gmra.mrb[0].mxu0 %v103
    %v181 = vpop.f32.mrb[0].mxu0
    %v182 = vadd.f32 %v88, %v181
    %v183 = vpop.f32.mrb[0].mxu0
    %184 = vmatprep.mubr.f32.mxu0 0.0
    %185 = vmatmul.mubr.f32.gmra.mrb[0].mxu0 %v105
    %v186 = vpop.f32.mrb[0].mxu0
    %v187 = vadd.f32 %v92, %v186
    %v188 = vpop.f32.mrb[0].mxu0
    %189 = vmatprep.mubr.f32.mxu0 0.0
    %190 = vmatmul.mubr.f32.gmra.mrb[0].mxu0 %v107
    %v191 = vpop.f32.mrb[0].mxu0
    %v192 = vadd.f32 %v96, %v191
    %v193 = vpop.f32.mrb[0].mxu0
    %194 = vmatprep.mubr.f32.mxu0 0.0
    %195 = vmatmul.mubr.f32.gmra.mrb[0].mxu0 %v109
    %v196 = vpop.f32.mrb[0].mxu0
    %v197 = vadd.f32 %v100, %v196
    %v198 = vpop.f32.mrb[0].mxu0
    %199 = vdwg.mxu0
    %v200 = vmax.f32 %v182, 0.0
    %v201 = vmax.f32 %v187, 0.0
    %v202 = vmax.f32 %v192, 0.0
    %v203 = vmax.f32 %v197, 0.0
    %205 = vset.pattern.permute.xlu0 30
    %206 = vperm.xlu0 %205, %v31
    %v207 = vpop.permute.xlu0 %206
    %v209 = vsel %vm102, %v31, 0
    %v212 = vsel %vm111, %v203, 0
    %214 = vmatprep.subr.mxu0 0.0
    %215 = vmatpush1.msra.mxu0 %v200
    %216 = vmatprep.subr.mxu0 0.0
    %217 = vmatpush1.msra.mxu0 %v201
    %218 = vmatprep.subr.mxu0 0.0
    %219 = vmatpush1.msra.mxu0 %v202
    %220 = vmatprep.subr.mxu0 0.0
    %221 = vmatpush1.msra.mxu0 %v212
    %222 = vmatprep.subr.mxu0 0.0
    %223 = vmatpush1.msra.mxu0 0.0
    %224 = vmatprep.subr.mxu0 0.0
    %225 = vmatpush1.msra.mxu0 0.0
    %226 = vmatprep.subr.mxu0 0.0
    %227 = vmatpush1.msra.mxu0 0.0
    %228 = vmatprep.subr.mxu0 0.0
    %229 = vmatpush1.msra.mxu0 0.0
    %230 = vmatprep.subr.mxu0 0.0
    %231 = vmatpush1.msra.mxu0 0.0
    %232 = vmatprep.subr.mxu0 0.0
    %233 = vmatpush1.msra.mxu0 0.0
    %234 = vmatprep.subr.mxu0 0.0
    %235 = vmatpush1.msra.mxu0 0.0
    %236 = vmatprep.subr.mxu0 0.0
    %237 = vmatpush1.msra.mxu0 0.0
    %238 = vmatprep.subr.mxu0 0.0
    %239 = vmatpush1.msra.mxu0 0.0
    %240 = vmatprep.subr.mxu0 0.0
    %241 = vmatpush1.msra.mxu0 0.0
    %242 = vmatprep.subr.mxu0 0.0
    %243 = vmatpush1.msra.mxu0 0.0
    %244 = vmatprep.subr.mxu0 0.0
    %245 = vmatpush1.msra.mxu0 0.0
    %246 = vmatprep.subr.mxu0 0.0
    %247 = vmatpush1.msra.mxu0 0.0
    %248 = vmatprep.subr.mxu0 0.0
    %249 = vmatpush1.msra.mxu0 0.0
    %250 = vmatprep.subr.mxu0 0.0
    %251 = vmatpush1.msra.mxu0 0.0
    %252 = vmatprep.subr.mxu0 0.0
    %253 = vmatpush1.msra.mxu0 0.0
    %254 = vmatprep.subr.mxu0 0.0
    %255 = vmatpush1.msra.mxu0 0.0
    %256 = vmatprep.subr.mxu0 0.0
    %257 = vmatpush1.msra.mxu0 0.0
    %258 = vmatprep.subr.mxu0 0.0
    %259 = vmatpush1.msra.mxu0 0.0
    %260 = vmatprep.subr.mxu0 0.0
    %261 = vmatpush1.msra.mxu0 0.0
    %262 = vmatprep.subr.mxu0 0.0
    %263 = vmatpush1.msra.mxu0 0.0
    %264 = vmatprep.subr.mxu0 0.0
    %265 = vmatpush1.msra.mxu0 0.0
    %266 = vmatprep.subr.mxu0 0.0
    %267 = vmatpush1.msra.mxu0 0.0
    %268 = vmatprep.subr.mxu0 0.0
    %269 = vmatpush1.msra.mxu0 0.0
    %270 = vmatprep.subr.mxu0 0.0
    %271 = vmatpush1.msra.mxu0 0.0
    %272 = vmatprep.subr.mxu0 0.0
    %273 = vmatpush1.msra.mxu0 0.0
    %274 = vmatprep.subr.mxu0 0.0
    %275 = vmatpush1.msra.mxu0 0.0
    %276 = vmatprep.subr.mxu0 0.0
    %277 = vmatpush1.msra.mxu0 0.0
    %278 = vmatprep.mubr.f32.mxu0 0.0
    %279 = vmatmul.mubr.f32.gmra.mrb[0].mxu0 %v209
    %v280 = vpop.f32.mrb[0].mxu0
    %v281 = vadd.f32 %v207, %v280
    %v282 = vpop.f32.mrb[0].mxu0
    %283 = vdwg.mxu0
    %284 = vst [vmem:[#allocation5] sm:$0x7] %v281
    // Predicated region
    $region14: #{tpu_custom_call.1} parent=1 // pred_check
      _
    $region15: #{tpu_custom_call.1} parent=1 // pred_check_branch
      %286 = sbr.rel (0) target = $region17
    $region16: #{tpu_custom_call.1} parent=1 // pred_region
      %s288 = ssub.s32 64, 64
      %289 = vsyncadd [#allocation4], %s288
      %s291 = sshll.u32 [#allocation5], 4
      %s292 = int_to_ptr.vmem [resolvable:$true] %s291
      %294 = dma.vmem_to_hbm [thread:$0]  %s292, 64, %s2, [#allocation4]
    $region17: #{tpu_custom_call.1} parent=1 // pred_fallthru
      _
    // Predicated region
    $region18: #{tpu_custom_call.1} parent=1 // pred_check
      _
    $region19: #{tpu_custom_call.1} parent=1 // pred_check_branch
      %296 = sbr.rel (0) target = $region21
    $region20: #{tpu_custom_call.1} parent=1 // pred_region
      %297 = dma.done [#allocation4], 64
    $region21: #{tpu_custom_call.1} parent=1 // pred_fallthru
      _
    %298 = vsyncpa [#allocation3], 1
    %299 = vsyncpa [#allocation4], 1

</llo_original>
